<compile_context>
chip_gen: v7x
topology: tpu7x:2x2x1
jax: 0.10.0
libtpu: 0.0.40
codegen_flags: <defaults>
</compile_context>

<pallas_src>
import functools

import jax
import jax.numpy as jnp
from jax.experimental import pallas as pl
from jax.experimental.pallas import tpu as pltpu


# ----------------------------------------------------------------------------
# small helpers
# ----------------------------------------------------------------------------
def _round_up(x, m):
    return ((x + m - 1) // m) * m


def _fit_last(x, n):
    """Pad (with zeros) or truncate the last axis to length n."""
    cur = x.shape[-1]
    if cur == n:
        return x
    if cur > n:
        return x[..., :n]
    pad = [(0, 0)] * (x.ndim - 1) + [(0, n - cur)]
    return jnp.pad(x, pad)


def _choose_blocks(n_required, tail, block_lanes):
    """Lane-block size BN (multiple of the halo block TB, itself x128)."""
    tb = _round_up(max(tail, 1), 128)
    bn = _round_up(max(block_lanes, tb), tb)
    bn = min(bn, _round_up(n_required, tb))
    nb = pl.cdiv(n_required, bn)
    return bn, tb, nb


def _tap(cur, halo, off, bn):
    """Lanes [off, off+bn) of the concatenation [cur | halo] (static off)."""
    if off == 0:
        return cur
    return jnp.concatenate([cur[:, off:], halo[:, :off]], axis=1)


# ----------------------------------------------------------------------------
# Kernel 1: fused pair of 3x3 convs (shared weights), lane-blocked, K=9*Ci MXU
# ----------------------------------------------------------------------------
def _conv_kernel(xc_ref, xh_ref, w_ref, b_ref, o_ref, *, offs, bn):
    xc = xc_ref[0]                                      # (Cip, BN)  current block
    xh = xh_ref[0]                                      # (Cip, TB)  halo block
    cols = [_tap(xc, xh, off, bn) for off in offs]      # 9 x (Cip, BN)
    col = jnp.concatenate(cols, axis=0)                 # (9*Cip, BN) im2col tile
    acc = jnp.dot(w_ref[...], col, preferred_element_type=jnp.float32)
    o_ref[0] = acc + b_ref[...]


def conv3x3_pair(x_f, x_m, w, b, *, block_lanes=2048, compute_dtype=jnp.bfloat16):
    """Two 3x3 convs (stride 1, zero padding 1) sharing weights, one launch.

    x_f: (B, Ci, H, W)      -> (B, Co, H, W)
    x_m: (B, Ci, H+2, W+2)  -> (B, Co, H+2, W+2)   (already replicate-padded)
    """
    B, Ci, H, W = x_f.shape
    Co = w.shape[0]
    assert x_m.shape == (B, Ci, H + 2, W + 2)
    Hp, Wp = H + 4, W + 4
    Cip = _round_up(Ci, 8)
    S = 2 * B

    # zero-pad f by 2, m by 1 -> both live on the same (Hp, Wp) padded canvas
    xf = jnp.pad(x_f, ((0, 0), (0, Cip - Ci), (2, 2), (2, 2)))
    xm = jnp.pad(x_m, ((0, 0), (0, Cip - Ci), (1, 1), (1, 1)))
    x = jnp.concatenate([xf, xm], axis=0).astype(compute_dtype)   # (S, Cip, Hp, Wp)

    n_req = (Hp - 2) * Wp                       # valid output rows, all columns
    tail = 2 * Wp + 2                           # largest tap offset
    BN, TB, NB = _choose_blocks(n_req, tail, block_lanes)
    NOUT, NIN = NB * BN, NB * BN + TB
    halo_stride = BN // TB

    x_flat = _fit_last(x.reshape(S, Cip, Hp * Wp), NIN)

    w2 = jnp.pad(w, ((0, 0), (0, Cip - Ci), (0, 0), (0, 0)))
    w2 = jnp.transpose(w2, (0, 2, 3, 1)).reshape(Co, 9 * Cip).astype(compute_dtype)
    offs = tuple(dy * Wp + dx for dy in range(3) for dx in range(3))

    out = pl.pallas_call(
        functools.partial(_conv_kernel, offs=offs, bn=BN),
        grid=(S, NB),
        in_specs=[
            pl.BlockSpec((1, Cip, BN), lambda s, j: (s, 0, j)),
            pl.BlockSpec((1, Cip, TB), lambda s, j: (s, 0, (j + 1) * halo_stride)),
            pl.BlockSpec((Co, 9 * Cip), lambda s, j: (0, 0)),
            pl.BlockSpec((Co, 1), lambda s, j: (0, 0)),
        ],
        out_specs=pl.BlockSpec((1, Co, BN), lambda s, j: (s, 0, j)),
        out_shape=jax.ShapeDtypeStruct((S, Co, NOUT), jnp.float32),
        compiler_params=pltpu.CompilerParams(
            dimension_semantics=("parallel", "parallel")),
    )(x_flat, x_flat, w2, b.reshape(Co, 1).astype(jnp.float32))

    out = out[:, :, :n_req].reshape(S, Co, Hp - 2, Wp)
    out_f = out[:B, :, 1:H + 1, 1:W + 1]        # conv(F, pad=1)
    out_m = out[B:, :, :H + 2, :W + 2]          # conv(replicate_pad(m), pad=1)
    return out_f, out_m


# ----------------------------------------------------------------------------
# Kernel 2: fused 3x3-neighbourhood attention -> local displacement
# ----------------------------------------------------------------------------
def _attn_kernel(f_ref, mc_ref, mh_ref, o_ref, *, offs, bn, inv_temp):
    f = f_ref[0]                                        # (Cmp, BN)  queries
    mc = mc_ref[0]                                      # (Cmp, BN)  keys
    mh = mh_ref[0]                                      # (Cmp, TB)  key halo
    s = [jnp.sum(_tap(mc, mh, off, bn) * f, axis=0, keepdims=True) * inv_temp
         for off in offs]                               # 9 x (1, BN)
    mx = s[0]
    for t in range(1, 9):
        mx = jnp.maximum(mx, s[t])
    e = [jnp.exp(v - mx) for v in s]
    denom = e[0]
    for t in range(1, 9):
        denom = denom + e[t]
    inv = 1.0 / denom        # exact: the displacement feeds 2**int_steps warps
    # attention @ R with R rows = (dy-1, dx-1) in {-1,0,1} -> signed prob sums
    dy = (e[6] + e[7] + e[8]) - (e[0] + e[1] + e[2])
    dx = (e[2] + e[5] + e[8]) - (e[0] + e[3] + e[6])
    o_ref[0, 0:1, :] = dy * inv
    o_ref[0, 1:2, :] = dx * inv


def attention_disp(f, m_proj, temperature, *, block_lanes=2048):
    """f: (B,Cm,H,W) queries, m_proj: (B,Cm,H+2,W+2) keys -> (B,2,H,W)."""
    B, Cm, H, W = f.shape
    Hp, Wp = H + 2, W + 2
    assert m_proj.shape == (B, Cm, Hp, Wp)
    Cmp = _round_up(Cm, 8)

    n_req = H * Wp
    tail = 2 * Wp + 2
    BN, TB, NB = _choose_blocks(n_req, tail, block_lanes)
    NOUT, NIN = NB * BN, NB * BN + TB
    halo_stride = BN // TB

    # queries embedded on the padded key grid (zeros at invalid positions)
    f_pad = jnp.pad(f, ((0, 0), (0, Cmp - Cm), (0, 2), (0, 2)))
    f_flat = _fit_last(f_pad.reshape(B, Cmp, Hp * Wp).astype(jnp.float32), NOUT)
    m_pad = jnp.pad(m_proj, ((0, 0), (0, Cmp - Cm), (0, 0), (0, 0)))
    m_flat = _fit_last(m_pad.reshape(B, Cmp, Hp * Wp).astype(jnp.float32), NIN)

    offs = tuple(dy * Wp + dx for dy in range(3) for dx in range(3))
    out = pl.pallas_call(
        functools.partial(_attn_kernel, offs=offs, bn=BN,
                          inv_temp=1.0 / float(temperature)),
        grid=(B, NB),
        in_specs=[
            pl.BlockSpec((1, Cmp, BN), lambda b, j: (b, 0, j)),
            pl.BlockSpec((1, Cmp, BN), lambda b, j: (b, 0, j)),
            pl.BlockSpec((1, Cmp, TB), lambda b, j: (b, 0, (j + 1) * halo_stride)),
        ],
        out_specs=pl.BlockSpec((1, 2, BN), lambda b, j: (b, 0, j)),
        out_shape=jax.ShapeDtypeStruct((B, 2, NOUT), jnp.float32),
        compiler_params=pltpu.CompilerParams(
            dimension_semantics=("parallel", "parallel")),
    )(f_flat, m_flat, m_flat)

    return out[:, :, :n_req].reshape(B, 2, H, Wp)[:, :, :, :W]


# ----------------------------------------------------------------------------
# Kernel 3: separable bilinear grid sample (align_corners=True, border padding)
# grid holds raw pixel coordinates into `source`: channel 0 = row, channel 1 = col
# ----------------------------------------------------------------------------
def _grid_sample_kernel(src_ref, g_ref, o_ref, *, hs, ws):
    src = src_ref[0].astype(jnp.float32)                    # (C, hs, ws)
    c = src.shape[0]
    src2 = src.reshape(c * hs, ws)                          # rows = (c, h)
    gy = jnp.clip(g_ref[0, 0:1, :], 0.0, float(hs - 1))     # (1, PB)  border==clamp
    gx = jnp.clip(g_ref[0, 1:2, :], 0.0, float(ws - 1))
    pb = gy.shape[1]
    iw = jax.lax.broadcasted_iota(jnp.int32, (ws, pb), 0).astype(jnp.float32)
    wx = jnp.maximum(0.0, 1.0 - jnp.abs(gx - iw))           # (ws, PB) x-tent
    tmp = jnp.dot(src2, wx, preferred_element_type=jnp.float32)   # (c*hs, PB)
    ih = jax.lax.broadcasted_iota(jnp.int32, (hs, pb), 0).astype(jnp.float32)
    wy = jnp.maximum(0.0, 1.0 - jnp.abs(gy - ih))           # (hs, PB) y-tent
    res = jnp.sum(tmp.reshape(c, hs, pb) * wy[None, :, :], axis=1)   # (c, PB)
    o_ref[0] = res.astype(o_ref.dtype)


def grid_sample(source, grid, *, block_points=2048):
    """source: (B,C,Hs,Ws), grid: (B,2,Hg,Wg) raw pixel coords -> (B,C,Hg,Wg)."""
    B, C, Hs, Ws = source.shape
    Hg, Wg = grid.shape[2], grid.shape[3]
    P = Hg * Wg
    PB = min(_round_up(block_points, 128), _round_up(P, 128))
    NBP = pl.cdiv(P, PB)
    coords = _fit_last(grid.reshape(B, 2, P).astype(jnp.float32), NBP * PB)
    out = pl.pallas_call(
        functools.partial(_grid_sample_kernel, hs=Hs, ws=Ws),
        grid=(B, NBP),
        in_specs=[
            pl.BlockSpec((1, C, Hs, Ws), lambda b, j: (b, 0, 0, 0)),
            pl.BlockSpec((1, 2, PB), lambda b, j: (b, 0, j)),
        ],
        out_specs=pl.BlockSpec((1, C, PB), lambda b, j: (b, 0, j)),
        out_shape=jax.ShapeDtypeStruct((B, C, NBP * PB), jnp.float32),
        compiler_params=pltpu.CompilerParams(
            dimension_semantics=("parallel", "parallel"),
            vmem_limit_bytes=64 * 1024 * 1024),
    )(source, coords)
    return out[:, :, :P].reshape(B, C, Hg, Wg)


# ----------------------------------------------------------------------------
# Plain-JAX glue mirroring the module helpers (coordinate math, f32)
# ----------------------------------------------------------------------------
def identity_grid(B, H, W):
    gy, gx = jnp.meshgrid(jnp.arange(H, dtype=jnp.float32),
                          jnp.arange(W, dtype=jnp.float32), indexing='ij')
    return jnp.broadcast_to(jnp.stack([gy, gx], axis=0)[None], (B, 2, H, W))


def grid_upsample(grid):
    """PyTorch: grid/(in-1)*(out-1) then interpolate(x2, bilinear, align_corners=True)."""
    B, _, H, W = grid.shape
    H2, W2 = 2 * H, 2 * W
    scale = jnp.array([(H2 - 1) / (H - 1), (W2 - 1) / (W - 1)],
                      dtype=jnp.float32).reshape(1, 2, 1, 1)
    ys = jnp.arange(H2, dtype=jnp.float32) * ((H - 1) / (H2 - 1))
    xs = jnp.arange(W2, dtype=jnp.float32) * ((W - 1) / (W2 - 1))
    cy, cx = jnp.meshgrid(ys, xs, indexing='ij')
    coords = jnp.broadcast_to(jnp.stack([cy, cx], axis=0)[None], (B, 2, H2, W2))
    return grid_sample(grid * scale, coords)


# ----------------------------------------------------------------------------
# Decoder (2-D)
# ----------------------------------------------------------------------------
class DecoderPallas:
    def __init__(self, dimension, downsamples, matching_channels, start_channels,
                 max_channels, skip, initialize, int_steps, key):
        assert dimension == 2, "this Pallas port implements the 2-D path"
        self.dim = dimension
        self.downsamples = downsamples
        self.skip = skip
        self.int_steps = int_steps
        self.beta = float(initialize)          # nn.Parameter treated as static scalar
        self.weights, self.biases, self.match_channels = [], [], []
        for i in range(downsamples + 1):
            cin = min(max_channels, start_channels * 2 ** i * 2)
            cout = min(max_channels, matching_channels * 2 ** i)
            key, k1, k2 = jax.random.split(key, 3)
            self.weights.append(jax.random.normal(k1, (cout, cin, 3, 3), jnp.float32) * 0.1)
            self.biases.append(jax.random.normal(k2, (cout,), jnp.float32) * 0.01)
            self.match_channels.append(cout)
        # R (normalized 3x3 identity grid) is folded analytically into the
        # attention kernel as signed sums of the softmax weights.

    def __call__(self, F_list, M_list):
        composed = []
        for i in range(self.downsamples, -1, -1):
            if i != self.downsamples:
                composed[-1] = grid_upsample(composed[-1])
            if i == 0 and self.skip:
                g = composed[-1]
                idg = identity_grid(g.shape[0], g.shape[2], g.shape[3])
                composed.append(grid_sample(g, idg))
            else:
                Fi = F_list[i]
                B, _, H, W = Fi.shape
                if composed:
                    m_src = grid_sample(M_list[i].astype(jnp.bfloat16), composed[-1])
                else:
                    m_src = M_list[i]
                m_rep = jnp.pad(m_src, ((0, 0), (0, 0), (1, 1), (1, 1)), mode='edge')
                f, m_proj = conv3x3_pair(Fi, m_rep, self.weights[i], self.biases[i])
                temperature = float(self.match_channels[i]) ** 0.5
                local_disp = attention_disp(f, m_proj, temperature)
                local_grid = (local_disp * (self.beta / 2 ** self.int_steps)
                              + identity_grid(B, H, W))
                for _ in range(self.int_steps):                 # scaling & squaring
                    local_grid = grid_sample(local_grid, local_grid)
                if composed:
                    composed.append(grid_sample(composed[-1], local_grid))
                else:
                    composed.append(local_grid)
        return composed


# ----------------------------------------------------------------------------
# self-checks: exercise the multi-block + halo code paths vs. plain-JAX refs
# ----------------------------------------------------------------------------
def _ref_grid_sample(src, grid):
    B, C, Hs, Ws = src.shape
    gy = jnp.clip(grid[:, 0], 0.0, Hs - 1.0)
    gx = jnp.clip(grid[:, 1], 0.0, Ws - 1.0)
    y0 = jnp.floor(gy); x0 = jnp.floor(gx)
    ty = gy - y0; tx = gx - x0
    y0 = y0.astype(jnp.int32); x0 = x0.astype(jnp.int32)
    y1 = jnp.minimum(y0 + 1, Hs - 1); x1 = jnp.minimum(x0 + 1, Ws - 1)
    flat = src.reshape(B, C, Hs * Ws)

    def gat(yi, xi):
        idx = (yi * Ws + xi).reshape(B, 1, -1)
        g = jnp.take_along_axis(flat, jnp.broadcast_to(idx, (B, C, idx.shape[-1])), axis=2)
        return g.reshape(B, C, *yi.shape[1:])

    ty = ty[:, None]; tx = tx[:, None]
    return (gat(y0, x0) * (1 - ty) * (1 - tx) + gat(y0, x1) * (1 - ty) * tx
            + gat(y1, x0) * ty * (1 - tx) + gat(y1, x1) * ty * tx)


def _self_checks():
    # grid_sample: multi-block (PB=128) path vs. reference bilinear
    k1, k2 = jax.random.split(jax.random.PRNGKey(1))
    src = jax.random.normal(k1, (2, 3, 8, 8), jnp.float32)
    coords = jax.random.uniform(k2, (2, 2, 10, 13), jnp.float32, -1.0, 9.0)
    got = grid_sample(src, coords, block_points=128)
    ref = _ref_grid_sample(src, coords)
    err = float(jnp.max(jnp.abs(got - ref)))
    assert err < 5e-2, f"grid_sample mismatch: {err}"

    # conv pair: multi lane-block + halo-crossing taps vs. lax.conv (f32 path)
    k3, k4, k5, k6 = jax.random.split(jax.random.PRNGKey(2), 4)
    xF = jax.random.normal(k3, (1, 5, 16, 16), jnp.float32)
    xM = jax.random.normal(k4, (1, 5, 16, 16), jnp.float32)
    wc = jax.random.normal(k5, (3, 5, 3, 3), jnp.float32) * 0.2
    bc = jax.random.normal(k6, (3,), jnp.float32) * 0.1
    m_rep = jnp.pad(xM, ((0, 0), (0, 0), (1, 1), (1, 1)), mode='edge')
    f_out, m_out = conv3x3_pair(xF, m_rep, wc, bc, block_lanes=256,
                                compute_dtype=jnp.float32)
    dn = ('NCHW', 'OIHW', 'NCHW')
    ref_f = jax.lax.conv_general_dilated(xF, wc, (1, 1), ((1, 1), (1, 1)),
                                         dimension_numbers=dn) + bc.reshape(1, -1, 1, 1)
    ref_m = jax.lax.conv_general_dilated(m_rep, wc, (1, 1), ((1, 1), (1, 1)),
                                         dimension_numbers=dn) + bc.reshape(1, -1, 1, 1)
    err_f = float(jnp.max(jnp.abs(f_out - ref_f)))
    err_m = float(jnp.max(jnp.abs(m_out - ref_m)))
    assert err_f < 5e-2 and err_m < 5e-2, f"conv mismatch: {err_f}, {err_m}"


# ----------------------------------------------------------------------------
if __name__ == "__main__":
    _self_checks()

    key = jax.random.PRNGKey(0)
    B = 2
    downsamples = 1
    start_channels = 4
    matching_channels = 4
    max_channels = 32
    base = 16

    dec = DecoderPallas(dimension=2, downsamples=downsamples,
                        matching_channels=matching_channels,
                        start_channels=start_channels, max_channels=max_channels,
                        skip=False, initialize=0.1, int_steps=2,
                        key=jax.random.PRNGKey(42))

    F_list, M_list = [], []
    for i in range(downsamples + 1):
        c = min(max_channels, start_channels * 2 ** i * 2)
        h = base // (2 ** i)
        key, kf, km = jax.random.split(key, 3)
        F_list.append(jax.random.normal(kf, (B, c, h, h), jnp.float32))
        M_list.append(jax.random.normal(km, (B, c, h, h), jnp.float32))

    fwd = jax.jit(lambda Fs, Ms: dec(Fs, Ms))
    outs = jax.block_until_ready(fwd(F_list, M_list))

    assert outs[0].shape == (B, 2, base, base)
    assert outs[-1].shape == (B, 2, base, base)
    assert all(bool(jnp.isfinite(o).all()) for o in outs)
    print("KERNEL_OK")
</pallas_src>

<mosaic_0001>
module attributes {stable_mosaic.version = 11 : i64} {
  func.func @_grid_sample_kernel(%arg0: i32, %arg1: i32, %arg2: memref<1x3x8x8xf32, #tpu.memory_space<vmem>>, %arg3: memref<1x2x128xf32, #tpu.memory_space<vmem>>, %arg4: memref<1x3x128xf32, #tpu.memory_space<vmem>>) attributes {dimension_semantics = [#tpu.dimension_semantics<parallel>, #tpu.dimension_semantics<parallel>], iteration_bounds = array<i64: 2, 2>, scalar_prefetch = 0 : i64, scratch_operands = 0 : i64, tpu.core_type = #tpu.core_type<tc>, window_params = [{transform_indices = @transform_0, window_bounds = array<i64: 1, 3, 8, 8>}, {transform_indices = @transform_1, window_bounds = array<i64: 1, 2, 128>}, {transform_indices = @transform_2, window_bounds = array<i64: 1, 3, 128>}]} {
    %c0 = arith.constant 0 : index
    %c0_0 = arith.constant 0 : index
    %c0_1 = arith.constant 0 : index
    %c0_2 = arith.constant 0 : index
    %0 = vector.load %arg2[%c0, %c0_0, %c0_1, %c0_2] : memref<1x3x8x8xf32, #tpu.memory_space<vmem>>, vector<1x3x8x8xf32>
    %1 = vector.shape_cast %0 : vector<1x3x8x8xf32> to vector<3x8x8xf32>
    %2 = vector.shape_cast %1 : vector<3x8x8xf32> to vector<24x8xf32>
    %c0_3 = arith.constant 0 : index
    %c0_4 = arith.constant 0 : index
    %c0_5 = arith.constant 0 : index
    %3 = vector.load %arg3[%c0_3, %c0_4, %c0_5] : memref<1x2x128xf32, #tpu.memory_space<vmem>>, vector<1x1x128xf32>
    %4 = vector.shape_cast %3 : vector<1x1x128xf32> to vector<1x128xf32>
    %cst = arith.constant 0.000000e+00 : f32
    %cst_6 = arith.constant 7.000000e+00 : f32
    %5 = vector.broadcast %cst : f32 to vector<1x128xf32>
    %6 = arith.maximumf %5, %4 : vector<1x128xf32>
    %7 = vector.broadcast %cst_6 : f32 to vector<1x128xf32>
    %8 = arith.minimumf %7, %6 : vector<1x128xf32>
    %c0_7 = arith.constant 0 : index
    %c1 = arith.constant 1 : index
    %c0_8 = arith.constant 0 : index
    %9 = vector.load %arg3[%c0_7, %c1, %c0_8] : memref<1x2x128xf32, #tpu.memory_space<vmem>>, vector<1x1x128xf32>
    %10 = vector.shape_cast %9 : vector<1x1x128xf32> to vector<1x128xf32>
    %cst_9 = arith.constant 0.000000e+00 : f32
    %cst_10 = arith.constant 7.000000e+00 : f32
    %11 = vector.broadcast %cst_9 : f32 to vector<1x128xf32>
    %12 = arith.maximumf %11, %10 : vector<1x128xf32>
    %13 = vector.broadcast %cst_10 : f32 to vector<1x128xf32>
    %14 = arith.minimumf %13, %12 : vector<1x128xf32>
    %15 = tpu.iota {dimensions = array<i32: 0>} : vector<8x128xi32>
    %16 = arith.sitofp %15 : vector<8x128xi32> to vector<8x128xf32>
    %17 = vector.broadcast %14 : vector<1x128xf32> to vector<8x128xf32>
    %18 = arith.subf %17, %16 : vector<8x128xf32>
    %19 = math.absf %18 : vector<8x128xf32>
    %cst_11 = arith.constant 1.000000e+00 : f32
    %20 = vector.broadcast %cst_11 : f32 to vector<8x128xf32>
    %21 = arith.subf %20, %19 : vector<8x128xf32>
    %cst_12 = arith.constant 0.000000e+00 : f32
    %22 = vector.broadcast %cst_12 : f32 to vector<8x128xf32>
    %23 = arith.maximumf %22, %21 : vector<8x128xf32>
    %cst_13 = arith.constant dense<0.000000e+00> : vector<24x128xf32>
    %24 = tpu.matmul %2, %23, %cst_13 {dimension_numbers = #tpu.dot_dimension_numbers<[1], [0], [0], [1], [0, 0, 1, 1], [], []>} : vector<24x8xf32>, vector<8x128xf32>, vector<24x128xf32> -> vector<24x128xf32>
    %25 = tpu.iota {dimensions = array<i32: 0>} : vector<8x128xi32>
    %26 = arith.sitofp %25 : vector<8x128xi32> to vector<8x128xf32>
    %27 = vector.broadcast %8 : vector<1x128xf32> to vector<8x128xf32>
    %28 = arith.subf %27, %26 : vector<8x128xf32>
    %29 = math.absf %28 : vector<8x128xf32>
    %cst_14 = arith.constant 1.000000e+00 : f32
    %30 = vector.broadcast %cst_14 : f32 to vector<8x128xf32>
    %31 = arith.subf %30, %29 : vector<8x128xf32>
    %cst_15 = arith.constant 0.000000e+00 : f32
    %32 = vector.broadcast %cst_15 : f32 to vector<8x128xf32>
    %33 = arith.maximumf %32, %31 : vector<8x128xf32>
    %34 = vector.shape_cast %24 : vector<24x128xf32> to vector<3x8x128xf32>
    %35 = vector.shape_cast %33 : vector<8x128xf32> to vector<1x8x128xf32>
    %36 = vector.broadcast %35 : vector<1x8x128xf32> to vector<3x8x128xf32>
    %37 = arith.mulf %34, %36 : vector<3x8x128xf32>
    %cst_16 = arith.constant dense<0.000000e+00> : vector<3x128xf32>
    %38 = vector.multi_reduction <add>, %37, %cst_16 [1] : vector<3x8x128xf32> to vector<3x128xf32>
    %c0_17 = arith.constant 0 : index
    %c0_18 = arith.constant 0 : index
    %c0_19 = arith.constant 0 : index
    %39 = vector.load %arg4[%c0_17, %c0_18, %c0_19] : memref<1x3x128xf32, #tpu.memory_space<vmem>>, vector<1x3x128xf32>
    %40 = vector.shape_cast %39 : vector<1x3x128xf32> to vector<3x128xf32>
    %41 = vector.shape_cast %38 : vector<3x128xf32> to vector<1x3x128xf32>
    tpu.vector_store %arg4[%c0_17, %c0_18, %c0_19], %41 {strides = array<i32>} : memref<1x3x128xf32, #tpu.memory_space<vmem>>, vector<1x3x128xf32>,
    return
  }
  func.func @transform_0(%arg0: i32, %arg1: i32) -> (i32, i32, i32, i32) {
    %c0_i32 = arith.constant 0 : i32
    %c0_i32_0 = arith.constant 0 : i32
    %c0_i32_1 = arith.constant 0 : i32
    %c0_i32_2 = arith.constant 0 : i32
    return %arg0, %c0_i32, %c0_i32_0, %c0_i32_1 : i32, i32, i32, i32
  }
  func.func @transform_1(%arg0: i32, %arg1: i32) -> (i32, i32, i32) {
    %c0_i32 = arith.constant 0 : i32
    %c0_i32_0 = arith.constant 0 : i32
    return %arg0, %c0_i32, %arg1 : i32, i32, i32
  }
  func.func @transform_2(%arg0: i32, %arg1: i32) -> (i32, i32, i32) {
    %c0_i32 = arith.constant 0 : i32
    %c0_i32_0 = arith.constant 0 : i32
    return %arg0, %c0_i32, %arg1 : i32, i32, i32
  }
}

</mosaic_0001>

<llo_original>
// kernel: tpu_custom_call.1
$region0: #{tpu_custom_call.1}
  #allocation0 [shape = 'u32[]', space=smem, size = 0x4, offset = 0x4, fixed_abs, tag = 'smem constant byte address 0x4 - core index']
  #allocation1 [shape = 'u32[144,128]{1,0:T(1,128)}', space=vmem, size = 0x12000, scoped, tag = 'internal scratch']
  %s0 = inlined_call_operand.hbm [shape: f32[2,3,8,8], index: 0, kind: input, shape index: {}]
  %s1 = inlined_call_operand.hbm [shape: f32[2,2,256], index: 1, kind: input, shape index: {}]
  %s2 = inlined_call_operand.hbm [shape: f32[2,3,256], index: 2, kind: output, shape index: {}]
  %s3 = sld [smem:[#allocation0]]
  $region49: #{tpu_custom_call.1} parent=0
    _
  %s5 = ssub.s32 1, %s3
  %s6 = scalar_select 0, %s5, %s3
  $region1: #{tpu_custom_call.1} parent=0
    #allocation2 [shape = 'u8[24576]{0}', space=vmem, size = 0x6000, scoped, tag = 'input window, operand 0']
    #allocation3 [shape = 's32[2]{0}', space=sflag, size = 0x8, scoped, tag = 'scoped memory for tpu_custom_call.1']
    #allocation4 [shape = 's32[2]{0}', space=sflag, size = 0x8, scoped, tag = 'scoped memory for tpu_custom_call.1']
    #allocation5 [shape = 'u8[2048]{0}', space=vmem, size = 0x800, scoped, tag = 'input window, operand 1']
    #allocation6 [shape = 's32[2]{0}', space=sflag, size = 0x8, scoped, tag = 'scoped memory for tpu_custom_call.1']
    #allocation7 [shape = 'u8[4096]{0}', space=vmem, size = 0x1000, scoped, tag = 'output window, operand 0']
    %7 = vsyncpa [#allocation3], 0
    %s8 = scalar_lea.sflag [#allocation3], 1
    %9 = vsyncpa %s8, 0
    %10 = vsyncpa [#allocation6], 0
    %s11 = scalar_lea.sflag [#allocation6], 1
    %12 = vsyncpa %s11, 0
    %13 = vsyncpa [#allocation4], 0
    %s14 = scalar_lea.sflag [#allocation4], 1
    %15 = vsyncpa %s14, 0
    loop: start=0, step=1, limit=6
    $region2: #{tpu_custom_call.1} parent=1 // loop_pre_header
      _
    $region3: #{tpu_custom_call.1} parent=1 // loop_header
      %s17 = sphi 0, %s21
      %p18 = scmp.ge.s32.totalorder %s17, 6
      %s24 = sphi 0, %s36
      %s25 = sphi 0, %s32
      %s26 = sphi 0, %s24
      %s27 = sphi 0, %s25
      %s28 = sphi 0, %s26
      %s29 = sphi 0, %s27
      %s39 = sphi 0, %s41
      %s42 = sphi 0, %s39
      %s43 = sphi 0, %s42
      %s59 = sphi 0, %s43
      %s67 = sphi 0, %s69
      %s70 = sphi 0, %s67
      %s71 = sphi 0, %s70
      %s87 = sphi 0, %s71
      %s95 = sphi 0, %s97
      %s98 = sphi 0, %s95
      %s99 = sphi 0, %s98
      %s115 = sphi 0, %s99
    $region4: #{tpu_custom_call.1} parent=1 // loop_header_branch
      %20 = sbr.rel (%p18) target = $region8
    $region5: #{tpu_custom_call.1} parent=1 // loop_body
      %s22 = ssub.s32 %s17, 1
      %s23 = ssub.s32 %s17, 2
      %s30 = sadd.s32 1, %s25
      %p31 = scmp.ge.s32.totalorder %s30, 2
      %s32 = scalar_select %p31, 0, %s30
      %s33 = sadd.s32 1, %s24
      %s34 = scalar_select %p31, %s33, %s24
      %p35 = scmp.ge.s32.totalorder %s34, 2
      %s36 = scalar_select %p35, 0, %s34
      %s37 = ssub.s32 %s24, %s36
      %p38 = scmp.eq.s32.totalorder %s37, 0
      %s40 = sadd.s32 %s39, 1
      %s41 = scalar_select %p38, %s39, %s40
      %p44 = pneg %p38
      %p45 = scmp.eq.s32.totalorder %s17, 3
      %p46 = por %p44, %p45
      %p47 = scmp.ne.s32.totalorder %s39, %s42
      %p48 = scmp.eq.s32.totalorder %s17, 0
      %p49 = por %p47, %p48
      %p50 = scmp.ne.s32.totalorder %s39, %s42
      %p51 = scmp.eq.s32.totalorder %s22, 3
      %p52 = por %p50, %p51
      %p53 = scmp.ne.s32.totalorder %s42, %s43
      %p54 = scmp.eq.s32.totalorder %s22, 0
      %p55 = por %p53, %p54
      %p56 = scmp.ne.s32.totalorder %s42, %s43
      %p57 = scmp.eq.s32.totalorder %s23, 3
      %p58 = por %p56, %p57
      %p60 = scmp.ne.s32.totalorder %s43, %s59
      %p61 = scmp.eq.s32.totalorder %s23, 0
      %p62 = por %p60, %p61
      %s63 = ssub.s32 %s24, %s36
      %s64 = ssub.s32 %s25, %s32
      %s65 = sor.u32 %s63, %s64
      %p66 = scmp.eq.s32.totalorder %s65, 0
      %s68 = sadd.s32 %s67, 1
      %s69 = scalar_select %p66, %s67, %s68
      %p72 = pneg %p66
      %p73 = scmp.eq.s32.totalorder %s17, 3
      %p74 = por %p72, %p73
      %p75 = scmp.ne.s32.totalorder %s67, %s70
      %p76 = scmp.eq.s32.totalorder %s17, 0
      %p77 = por %p75, %p76
      %p78 = scmp.ne.s32.totalorder %s67, %s70
      %p79 = scmp.eq.s32.totalorder %s22, 3
      %p80 = por %p78, %p79
      %p81 = scmp.ne.s32.totalorder %s70, %s71
      %p82 = scmp.eq.s32.totalorder %s22, 0
      %p83 = por %p81, %p82
      %p84 = scmp.ne.s32.totalorder %s70, %s71
      %p85 = scmp.eq.s32.totalorder %s23, 3
      %p86 = por %p84, %p85
      %p88 = scmp.ne.s32.totalorder %s71, %s87
      %p89 = scmp.eq.s32.totalorder %s23, 0
      %p90 = por %p88, %p89
      %s91 = ssub.s32 %s24, %s36
      %s92 = ssub.s32 %s25, %s32
      %s93 = sor.u32 %s91, %s92
      %p94 = scmp.eq.s32.totalorder %s93, 0
      %s96 = sadd.s32 %s95, 1
      %s97 = scalar_select %p94, %s95, %s96
      %p100 = pneg %p94
      %p101 = scmp.eq.s32.totalorder %s17, 3
      %p102 = por %p100, %p101
      %p103 = scmp.ne.s32.totalorder %s95, %s98
      %p104 = scmp.eq.s32.totalorder %s17, 0
      %p105 = por %p103, %p104
      %p106 = scmp.ne.s32.totalorder %s95, %s98
      %p107 = scmp.eq.s32.totalorder %s22, 3
      %p108 = por %p106, %p107
      %p109 = scmp.ne.s32.totalorder %s98, %s99
      %p110 = scmp.eq.s32.totalorder %s22, 0
      %p111 = por %p109, %p110
      %p112 = scmp.ne.s32.totalorder %s98, %s99
      %p113 = scmp.eq.s32.totalorder %s23, 3
      %p114 = por %p112, %p113
      %p116 = scmp.ne.s32.totalorder %s99, %s115
      %p117 = scmp.eq.s32.totalorder %s23, 0
      %p118 = por %p116, %p117
      %p119 = scmp.le.s32.totalorder 1, %s17
      %p120 = scmp.lt.s32.totalorder %s17, 5
      %p121 = pnand %p119, %p120
      %p122 = pneg %p121
      // Predicated region
      $region9: #{tpu_custom_call.1} parent=5 // pred_check
        _
      $region10: #{tpu_custom_call.1} parent=5 // pred_check_branch
        %124 = sbr.rel (%p121) target = $region12
      $region11: #{tpu_custom_call.1} parent=5 // pred_region
        %s125 = ssub.s32 %s17, 1
      $region12: #{tpu_custom_call.1} parent=5 // pred_fallthru
        _
      %p126 = scmp.lt.s32.totalorder %s17, 4
      // Predicated region
      $region13: #{tpu_custom_call.1} parent=5 // pred_check
        %p127 = pneg %p126
      $region14: #{tpu_custom_call.1} parent=5 // pred_check_branch
        %129 = sbr.rel (%p127) target = $region16
      $region15: #{tpu_custom_call.1} parent=5 // pred_region
        // Predicated region
        $region17: #{tpu_custom_call.1} parent=15 // pred_check
          %p130 = pneg %p49
        $region18: #{tpu_custom_call.1} parent=15 // pred_check_branch
          %132 = sbr.rel (%p130) target = $region20
        $region19: #{tpu_custom_call.1} parent=15 // pred_region
          %s133 = sand.u32 %s39, 1
          %s134 = scalar_lea.sflag [#allocation3], %s133
          %s135 = sand.u32 %s39, 1
          %s136 = smul.addr %s135, 24
          %s137 = scalar_lea.vmem [#allocation2], %s136
          %s139 = ssub.s32 384, 384
          %140 = vsyncadd %s134, %s139
          %s141 = smul.addr %s24, 3
          %s142 = smul.addr %s141, 128
          %s143 = scalar_lea.hbm %s0, %s142
          %s144 = sshll.u32 %s137, 4
          %s145 = int_to_ptr.vmem [resolvable:$true] %s144
          %150 = dma.hbm_to_vmem [thread:$0]  %s143, 384, %s145, %s134, 128, 128, 8
        $region20: #{tpu_custom_call.1} parent=15 // pred_fallthru
          _
        // Predicated region
        $region21: #{tpu_custom_call.1} parent=15 // pred_check
          %p151 = pneg %p77
        $region22: #{tpu_custom_call.1} parent=15 // pred_check_branch
          %153 = sbr.rel (%p151) target = $region24
        $region23: #{tpu_custom_call.1} parent=15 // pred_region
          %s154 = sand.u32 %s67, 1
          %s155 = scalar_lea.sflag [#allocation6], %s154
          %s156 = sand.u32 %s67, 1
          %s157 = smul.addr %s156, 2
          %s158 = scalar_lea.vmem [#allocation5], %s157
          %s160 = ssub.s32 32, 32
          %161 = vsyncadd %s155, %s160
          %s162 = smul.addr %s24, 2
          %s163 = sadd.s32 %s25, %s162
          %s164 = smul.addr %s163, 32
          %s165 = scalar_lea.hbm %s1, %s164
          %s167 = sshll.u32 %s158, 4
          %s168 = int_to_ptr.vmem [resolvable:$true] %s167
          %170 = dma.hbm_to_vmem [thread:$0]  %s165, 32, %s168, %s155
        $region24: #{tpu_custom_call.1} parent=15 // pred_fallthru
          _
      $region16: #{tpu_custom_call.1} parent=5 // pred_fallthru
        _
      %p171 = scmp.le.s32.totalorder 1, %s17
      %p172 = scmp.lt.s32.totalorder %s17, 5
      %p173 = pnand %p171, %p172
      %p174 = pneg %p173
      // Predicated region
      $region25: #{tpu_custom_call.1} parent=5 // pred_check
        _
      $region26: #{tpu_custom_call.1} parent=5 // pred_check_branch
        %176 = sbr.rel (%p173) target = $region28
      $region27: #{tpu_custom_call.1} parent=5 // pred_region
        %s177 = ssub.s32 %s17, 1
        %s178 = sand.u32 %s42, 1
        %s179 = scalar_lea.sflag [#allocation3], %s178
        %s180 = sand.u32 %s42, 1
        %s181 = smul.addr %s180, 24
        %s182 = scalar_lea.vmem [#allocation2], %s181
        // Predicated region
        $region29: #{tpu_custom_call.1} parent=27 // pred_check
          %p183 = pneg %p55
        $region30: #{tpu_custom_call.1} parent=27 // pred_check_branch
          %185 = sbr.rel (%p183) target = $region32
        $region31: #{tpu_custom_call.1} parent=27 // pred_region
          %186 = dma.done %s179, 384
        $region32: #{tpu_custom_call.1} parent=27 // pred_fallthru
          _
        %s187 = sand.u32 %s70, 1
        %s188 = scalar_lea.sflag [#allocation6], %s187
        %s189 = sand.u32 %s70, 1
        %s190 = smul.addr %s189, 2
        %s191 = scalar_lea.vmem [#allocation5], %s190
        // Predicated region
        $region33: #{tpu_custom_call.1} parent=27 // pred_check
          %p192 = pneg %p83
        $region34: #{tpu_custom_call.1} parent=27 // pred_check_branch
          %194 = sbr.rel (%p192) target = $region36
        $region35: #{tpu_custom_call.1} parent=27 // pred_region
          %195 = dma.done %s188, 32
        $region36: #{tpu_custom_call.1} parent=27 // pred_fallthru
          _
        %s196 = sand.u32 %s42, 1
        %s197 = scalar_lea.sflag [#allocation3], %s196
        %s198 = sand.u32 %s42, 1
        %s199 = smul.addr %s198, 24
        %s200 = scalar_lea.vmem [#allocation2], %s199
        %p201 = pneg %p55
        %p202 = pneg %p52
        %s203 = sand.u32 %s70, 1
        %s204 = scalar_lea.sflag [#allocation6], %s203
        %s205 = sand.u32 %s70, 1
        %s206 = smul.addr %s205, 2
        %s207 = scalar_lea.vmem [#allocation5], %s206
        %p208 = pneg %p83
        %p209 = pneg %p80
        %p210 = pneg %p111
        %p211 = pneg %p108
        %s212 = sand.u32 %s98, 1
        %s213 = scalar_lea.sflag [#allocation4], %s212
        %s214 = sand.u32 %s98, 1
        %s215 = smul.addr %s214, 4
        %s216 = scalar_lea.vmem [#allocation7], %s215
        %v217 = vld [vmem:[%s182] sm:$0xff]
        %v218 = vld [vmem:[%s182 + $0x8] sm:$0xff]
        %v219 = vld [vmem:[%s182 + $0x10] sm:$0xff]
        %v220 = vld [vmem:[%s191] sm:$0x1]
        %v221 = vmax.f32 %v220, 0.0
        %v222 = vmin.f32 %v221, 7.0
        %v223 = vld [vmem:[%s191 + $0x1] sm:$0x1]
        %v224 = vmax.f32 %v223, 0.0
        %v225 = vmin.f32 %v224, 7.0
        %v226 = vlaneseq
        %v227 = vshrl.u32 %v226, 7
        %v228 = vcvt.s32.f32 %v227
        %v229 = vlaneseq
        %v230 = vshrl.u32 %v229, 7
        %v231 = vsub.s32 0, %v230
        %v232 = vrot.slane %v225, %v231
        %v233 = vsub.f32 %v232, %v228
        %v234 = vand.u32 2147483647, %v233
        %v235 = vsub.f32 1.0, %v234
        %v236 = vmax.f32 %v235, 0.0
        %vm237 = vcmask 64512
        %v239 = vsel %vm237, %v217, 0
        %v242 = vsel %vm237, %v218, 0
        %v245 = vsel %vm237, %v219, 0
        %247 = vmatprep.subr.mxu0 0.0
        %248 = vmatpush1.msra.mxu0 %v236
        %249 = vmatprep.subr.mxu0 0.0
        %250 = vmatpush1.msra.mxu0 0.0
        %251 = vmatprep.subr.mxu0 0.0
        %252 = vmatpush1.msra.mxu0 0.0
        %253 = vmatprep.subr.mxu0 0.0
        %254 = vmatpush1.msra.mxu0 0.0
        %255 = vmatprep.subr.mxu0 0.0
        %256 = vmatpush1.msra.mxu0 0.0
        %257 = vmatprep.subr.mxu0 0.0
        %258 = vmatpush1.msra.mxu0 0.0
        %259 = vmatprep.subr.mxu0 0.0
        %260 = vmatpush1.msra.mxu0 0.0
        %261 = vmatprep.subr.mxu0 0.0
        %262 = vmatpush1.msra.mxu0 0.0
        %263 = vmatprep.subr.mxu0 0.0
        %264 = vmatpush1.msra.mxu0 0.0
        %265 = vmatprep.subr.mxu0 0.0
        %266 = vmatpush1.msra.mxu0 0.0
        %267 = vmatprep.subr.mxu0 0.0
        %268 = vmatpush1.msra.mxu0 0.0
        %269 = vmatprep.subr.mxu0 0.0
        %270 = vmatpush1.msra.mxu0 0.0
        %271 = vmatprep.subr.mxu0 0.0
        %272 = vmatpush1.msra.mxu0 0.0
        %273 = vmatprep.subr.mxu0 0.0
        %274 = vmatpush1.msra.mxu0 0.0
        %275 = vmatprep.subr.mxu0 0.0
        %276 = vmatpush1.msra.mxu0 0.0
        %277 = vmatprep.subr.mxu0 0.0
        %278 = vmatpush1.msra.mxu0 0.0
        %279 = vmatprep.subr.mxu0 0.0
        %280 = vmatpush1.msra.mxu0 0.0
        %281 = vmatprep.subr.mxu0 0.0
        %282 = vmatpush1.msra.mxu0 0.0
        %283 = vmatprep.subr.mxu0 0.0
        %284 = vmatpush1.msra.mxu0 0.0
        %285 = vmatprep.subr.mxu0 0.0
        %286 = vmatpush1.msra.mxu0 0.0
        %287 = vmatprep.subr.mxu0 0.0
        %288 = vmatpush1.msra.mxu0 0.0
        %289 = vmatprep.subr.mxu0 0.0
        %290 = vmatpush1.msra.mxu0 0.0
        %291 = vmatprep.subr.mxu0 0.0
        %292 = vmatpush1.msra.mxu0 0.0
        %293 = vmatprep.subr.mxu0 0.0
        %294 = vmatpush1.msra.mxu0 0.0
        %295 = vmatprep.subr.mxu0 0.0
        %296 = vmatpush1.msra.mxu0 0.0
        %297 = vmatprep.subr.mxu0 0.0
        %298 = vmatpush1.msra.mxu0 0.0
        %299 = vmatprep.subr.mxu0 0.0
        %300 = vmatpush1.msra.mxu0 0.0
        %301 = vmatprep.subr.mxu0 0.0
        %302 = vmatpush1.msra.mxu0 0.0
        %303 = vmatprep.subr.mxu0 0.0
        %304 = vmatpush1.msra.mxu0 0.0
        %305 = vmatprep.subr.mxu0 0.0
        %306 = vmatpush1.msra.mxu0 0.0
        %307 = vmatprep.subr.mxu0 0.0
        %308 = vmatpush1.msra.mxu0 0.0
        %309 = vmatprep.subr.mxu0 0.0
        %310 = vmatpush1.msra.mxu0 0.0
        %311 = vmatprep.mubr.f32.mxu0 0.0
        %312 = vmatmul.mubr.f32.gmra.mrb[0].mxu0 %v239
        %v313 = vpop.f32.mrb[0].mxu0
        %v314 = vadd.f32 0.0, %v313
        %v315 = vpop.f32.mrb[0].mxu0
        %316 = vmatprep.mubr.f32.mxu0 0.0
        %317 = vmatmul.mubr.f32.gmra.mrb[0].mxu0 %v242
        %v318 = vpop.f32.mrb[0].mxu0
        %v319 = vadd.f32 0.0, %v318
        %v320 = vpop.f32.mrb[0].mxu0
        %321 = vmatprep.mubr.f32.mxu0 0.0
        %322 = vmatmul.mubr.f32.gmra.mrb[0].mxu0 %v245
        %v323 = vpop.f32.mrb[0].mxu0
        %v324 = vadd.f32 0.0, %v323
        %v325 = vpop.f32.mrb[0].mxu0
        %326 = vdwg.mxu0
        %v327 = vlaneseq
        %v328 = vshrl.u32 %v327, 7
        %v329 = vsub.s32 0, %v328
        %v330 = vrot.slane %v222, %v329
        %v331 = vsub.f32 %v330, %v228
        %v332 = vand.u32 2147483647, %v331
        %v333 = vsub.f32 1.0, %v332
        %v334 = vmax.f32 %v333, 0.0
        %v335 = vmul.f32 %v314, %v334
        %v336 = vmul.f32 %v319, %v334
        %v337 = vmul.f32 %v324, %v334
        %v338 = vrot.slane %v335, 4
        %v339 = vadd.f32 %v335, %v338
        %v340 = vrot.slane %v339, 2
        %v341 = vadd.f32 %v339, %v340
        %v342 = vrot.slane %v341, 1
        %v343 = vadd.f32 %v341, %v342
        %v344 = vrot.slane %v336, 4
        %v345 = vadd.f32 %v336, %v344
        %v346 = vrot.slane %v345, 2
        %v347 = vadd.f32 %v345, %v346
        %v348 = vrot.slane %v347, 1
        %v349 = vadd.f32 %v347, %v348
        %v350 = vrot.slane %v337, 4
        %v351 = vadd.f32 %v337, %v350
        %v352 = vrot.slane %v351, 2
        %v353 = vadd.f32 %v351, %v352
        %v354 = vrot.slane %v353, 1
        %v355 = vadd.f32 %v353, %v354
        %vm359 = vcmask 1041409
        %v360 = vsel %vm359, %v349, %v343
        %vm361 = vcmask 1042434
        %v362 = vsel %vm361, %v355, %v360
        %364 = vst [vmem:[%s216] sm:$0x7] %v362
        %s365 = sand.u32 %s98, 1
        %s366 = scalar_lea.sflag [#allocation4], %s365
        %s367 = sand.u32 %s98, 1
        %s368 = smul.addr %s367, 4
        %s369 = scalar_lea.vmem [#allocation7], %s368
        // Predicated region
        $region37: #{tpu_custom_call.1} parent=27 // pred_check
          %p370 = pneg %p108
        $region38: #{tpu_custom_call.1} parent=27 // pred_check_branch
          %372 = sbr.rel (%p370) target = $region40
        $region39: #{tpu_custom_call.1} parent=27 // pred_region
          %s374 = ssub.s32 64, 64
          %375 = vsyncadd %s366, %s374
          %s376 = smul.addr %s26, 2
          %s377 = sadd.s32 %s27, %s376
          %s378 = smul.addr %s377, 64
          %s379 = scalar_lea.hbm %s2, %s378
          %s381 = sshll.u32 %s369, 4
          %s382 = int_to_ptr.vmem [resolvable:$true] %s381
          %384 = dma.vmem_to_hbm [thread:$0]  %s382, 64, %s379, %s366
        $region40: #{tpu_custom_call.1} parent=27 // pred_fallthru
          _
      $region28: #{tpu_custom_call.1} parent=5 // pred_fallthru
        _
      %p385 = scmp.le.s32.totalorder 2, %s17
      // Predicated region
      $region41: #{tpu_custom_call.1} parent=5 // pred_check
        %p386 = pneg %p385
      $region42: #{tpu_custom_call.1} parent=5 // pred_check_branch
        %388 = sbr.rel (%p386) target = $region44
      $region43: #{tpu_custom_call.1} parent=5 // pred_region
        %s389 = ssub.s32 %s17, 2
        // Predicated region
        $region45: #{tpu_custom_call.1} parent=43 // pred_check
          %p390 = pneg %p114
        $region46: #{tpu_custom_call.1} parent=43 // pred_check_branch
          %392 = sbr.rel (%p390) target = $region48
        $region47: #{tpu_custom_call.1} parent=43 // pred_region
          %s393 = sand.u32 %s99, 1
          %s394 = scalar_lea.sflag [#allocation4], %s393
          %s395 = sand.u32 %s99, 1
          %s396 = smul.addr %s395, 4
          %s397 = scalar_lea.vmem [#allocation7], %s396
          %398 = dma.done %s394, 64
        $region48: #{tpu_custom_call.1} parent=43 // pred_fallthru
          _
      $region44: #{tpu_custom_call.1} parent=5 // pred_fallthru
        _
    $region6: #{tpu_custom_call.1} parent=1 // loop_footer
      %s21 = sadd.s32 1, %s17
    $region7: #{tpu_custom_call.1} parent=1 // loop_footer_branch
      %16 = sbr.rel target = $region3
    $region8: #{tpu_custom_call.1} parent=1 // loop_exit
      _
    %399 = vsyncpa [#allocation3], 1
    %s400 = scalar_lea.sflag [#allocation3], 1
    %401 = vsyncpa %s400, 1
    %402 = vsyncpa [#allocation6], 1
    %s403 = scalar_lea.sflag [#allocation6], 1
    %404 = vsyncpa %s403, 1
    %405 = vsyncpa [#allocation4], 1
    %s406 = scalar_lea.sflag [#allocation4], 1
    %407 = vsyncpa %s406, 1

</llo_original>
